<compile_context>
chip_gen: v6e
topology: v6e:2x2x1
jax: 0.10.0
libtpu: 0.0.40
codegen_flags: <defaults>
</compile_context>

<pallas_src>
import functools

import jax
import jax.numpy as jnp
from jax.experimental import pallas as pl
from jax.experimental.pallas import tpu as pltpu

_K = 3  # kernel_size == stride (PyTorch MaxPool2d default: stride = kernel_size)


def _pool_full_rows(x, num_oh, ow_full, rem_w):
    """Pool `num_oh` full 3-row windows from x: (3*num_oh, w, sb, lanes).

    Returns (interior, tail):
      interior: (num_oh, ow_full, sb, lanes) or None if ow_full == 0
      tail:     (num_oh, sb, lanes)          or None if rem_w  == 0
    Fused 9-way max: outer-dim reshapes only, all maxima are pure VPU elementwise.
    """
    sb, lanes = x.shape[-2], x.shape[-1]
    interior = None
    if ow_full:
        xi = x[:, : _K * ow_full].reshape(num_oh, _K, ow_full, _K, sb, lanes)
        interior = xi[:, 0, :, 0]
        for dh in range(_K):
            for dw in range(_K):
                if dh or dw:
                    interior = jnp.maximum(interior, xi[:, dh, :, dw])
    tail = None
    if rem_w:
        xt = x[:, _K * ow_full:].reshape(num_oh, _K, rem_w, sb, lanes)
        tail = xt[:, 0, 0]
        for dh in range(_K):
            for dw in range(rem_w):
                if dh or dw:
                    tail = jnp.maximum(tail, xt[:, dh, dw])
    return interior, tail


def _pool_ragged_row(x, rem_h, ow_full, rem_w):
    """Pool the final (ceil_mode) output row from x: (rem_h, w, sb, lanes)."""
    a = x[0]
    for r in range(1, rem_h):
        a = jnp.maximum(a, x[r])                     # (w, sb, lanes)
    interior = None
    if ow_full:
        ai = a[: _K * ow_full].reshape(ow_full, _K, a.shape[-2], a.shape[-1])
        interior = jnp.maximum(jnp.maximum(ai[:, 0], ai[:, 1]), ai[:, 2])
    tail = None
    if rem_w:
        at = a[_K * ow_full:]
        tail = at[0]
        for c in range(1, rem_w):
            tail = jnp.maximum(tail, at[c])          # (sb, lanes)
    return interior, tail


def _maxpool_kernel(x_ref, o_ref, *, strip_oh, last_oh, rem_h, n_h, ow_full, rem_w):
    # x_ref: (block_h, w, sb, lanes) -- planes on (sublane, lane); H, W are outer.
    # o_ref: (strip_oh, ow, sb, lanes)

    def emit_full(num_oh):
        interior, tail = _pool_full_rows(x_ref[: _K * num_oh], num_oh, ow_full, rem_w)
        if interior is not None:
            o_ref[:num_oh, :ow_full] = interior
        if tail is not None:
            o_ref[:num_oh, ow_full:] = tail[:, None]

    def emit_last():
        full = last_oh if rem_h == _K else last_oh - 1
        if full > 0:
            interior, tail = _pool_full_rows(x_ref[: _K * full], full, ow_full, rem_w)
            if interior is not None:
                o_ref[:full, :ow_full] = interior
            if tail is not None:
                o_ref[:full, ow_full:] = tail[:, None]
        if rem_h != _K:
            xr = x_ref[_K * full: _K * full + rem_h]     # only the valid rows
            interior, tail = _pool_ragged_row(xr, rem_h, ow_full, rem_w)
            if interior is not None:
                o_ref[full:full + 1, :ow_full] = interior[None]
            if tail is not None:
                o_ref[full:full + 1, ow_full:] = tail[None, None]

    if rem_h == _K and last_oh == strip_oh:
        emit_full(strip_oh)        # every strip is full: no branching needed
    elif n_h == 1:
        emit_last()                # single (ragged) strip
    else:
        gh = pl.program_id(1)

        @pl.when(gh < n_h - 1)
        def _():
            emit_full(strip_oh)

        @pl.when(gh == n_h - 1)
        def _():
            emit_last()


def _vmem_capacity_bytes():
    try:
        cap = getattr(pltpu.get_tpu_info(), "vmem_capacity_bytes", None)
        if cap:
            return int(cap)
    except Exception:
        pass
    return 64 * 1024 * 1024  # conservative default (v7x-class per-TC VMEM)


def maxpool2d_k3_ceil(x):
    """Equivalent of nn.MaxPool2d(kernel_size=3, ceil_mode=True) on NCHW input."""
    n, c, h, w = x.shape
    dtype = x.dtype
    itemsize = jnp.dtype(dtype).itemsize
    oh, ow = -(-h // _K), -(-w // _K)                 # ceil(H/3), ceil(W/3)
    ow_full, rem_w = w // _K, w % _K                  # full / ragged output columns
    rem_h = h - _K * (oh - 1)                         # rows in last output row (1..3)

    # ---- layout: planes (N*C) on (sublane, lane); H, W stay outer dims ---------
    p = n * c
    lanes = 128 if p >= 128 else p
    p_pad = -(-p // lanes) * lanes
    subl = p_pad // lanes

    # ---- per-generation sizing --------------------------------------------------
    cap = _vmem_capacity_bytes()                      # 64 MiB v7x, 128 MiB v5e/v6e
    vmem_limit = int(min(cap * 3 // 4, 96 * 1024 * 1024))          # 48 / 96 MiB
    target_blk = int(min(8 * 1024 * 1024, max(2 * 1024 * 1024, cap // 16)))

    # dtype-aware sublane chunk (f32: 8, bf16: 16, int8: 32)
    sub_native = max(1, 32 // itemsize)
    if subl <= sub_native:
        sb = subl
    else:
        divisors = [d for d in range(sub_native, subl + 1, sub_native) if subl % d == 0]
        if not divisors:
            sb = subl
        else:
            fitting = [d for d in divisors if _K * w * d * lanes * itemsize <= target_blk]
            sb = max(fitting) if fitting else min(divisors)
    n_p = subl // sb

    # H strips: multiples of 3 input rows, sized toward the per-block byte target.
    orow_bytes = _K * w * sb * lanes * itemsize       # one 3-row window's input bytes
    strip_oh = max(1, min(oh, target_blk // orow_bytes))
    n_h = -(-oh // strip_oh)
    if n_p * n_h == 1 and oh >= 2:
        # give v7x's two TensorCores (and the DMA pipeline) at least 2 steps
        strip_oh = -(-oh // 2)
        n_h = -(-oh // strip_oh)
    strip_ih = _K * strip_oh
    block_h = min(strip_ih, h)                        # never exceed the array extent
    last_oh = oh - (n_h - 1) * strip_oh

    # (N, C, H, W) -> (H, W, P) channels-last, then split P into (sublane, lane).
    xt = jnp.transpose(x.reshape(p, h, w), (1, 2, 0))
    if p_pad != p:
        xt = jnp.pad(xt, ((0, 0), (0, 0), (0, p_pad - p)))
    xt = xt.reshape(h, w, subl, lanes)

    cost = pl.CostEstimate(
        flops=8 * oh * ow * p_pad,
        transcendentals=0,
        bytes_accessed=(h * w + oh * ow) * p_pad * itemsize,
    )
    kernel = functools.partial(
        _maxpool_kernel, strip_oh=strip_oh, last_oh=last_oh, rem_h=rem_h,
        n_h=n_h, ow_full=ow_full, rem_w=rem_w,
    )
    out = pl.pallas_call(
        kernel,
        out_shape=jax.ShapeDtypeStruct((oh, ow, subl, lanes), dtype),
        grid=(n_p, n_h),
        in_specs=[pl.BlockSpec((block_h, w, sb, lanes), lambda gp, gh: (gh, 0, gp, 0))],
        out_specs=pl.BlockSpec((strip_oh, ow, sb, lanes), lambda gp, gh: (gh, 0, gp, 0)),
        compiler_params=pltpu.CompilerParams(
            dimension_semantics=("parallel", "parallel"),
            vmem_limit_bytes=vmem_limit,
            allow_input_fusion=[True],
        ),
        cost_estimate=cost,
    )(xt)

    # (OH, OW, P) -> (N, C, OH, OW)
    out = out.reshape(oh, ow, p_pad)[:, :, :p]
    return jnp.transpose(out, (2, 0, 1)).reshape(n, c, oh, ow)


def _reference_maxpool(x):
    # Pure-JAX reference (pad with -inf, reshape into 3x3 windows, reduce).
    n, c, h, w = x.shape
    oh, ow = -(-h // _K), -(-w // _K)
    xp = jnp.pad(
        x,
        ((0, 0), (0, 0), (0, oh * _K - h), (0, ow * _K - w)),
        constant_values=-jnp.inf,
    )
    return xp.reshape(n, c, oh, _K, ow, _K).max(axis=(3, 5))


if __name__ == "__main__":
    # MaxPool2d has no learnable parameters.

    # 1) Random NCHW input (ceil_mode kicks in: 16 -> ceil(16/3) = 6).  Exercises
    #    the pl.when(full strip / ragged last strip) path with 2 H strips.
    key = jax.random.PRNGKey(0)
    x = jax.random.normal(key, (2, 4, 16, 16), dtype=jnp.float32)
    out = jax.block_until_ready(maxpool2d_k3_ceil(x))
    assert out.shape == (2, 4, 6, 6), out.shape
    assert out.dtype == x.dtype, out.dtype
    ref = _reference_maxpool(x)
    assert jnp.allclose(out, ref), "mismatch vs reference on random input"

    # 2) The exact 5x5 example from the original script (known answer [[2,3],[5,1]]).
    demo = jnp.array(
        [[1, 2, 0, 3, 1],
         [0, 1, 2, 3, 1],
         [1, 2, 1, 0, 0],
         [5, 2, 3, 1, 1],
         [2, 1, 0, 1, 1]],
        dtype=jnp.float32,
    ).reshape(1, 1, 5, 5)
    demo_out = jax.block_until_ready(maxpool2d_k3_ceil(demo))
    expected = jnp.array([[2.0, 3.0], [5.0, 1.0]]).reshape(1, 1, 2, 2)
    assert jnp.allclose(demo_out, expected), demo_out

    # 3) H, W multiples of 3: exercises the uniform (branch-free) multi-strip path.
    x2 = jax.random.normal(jax.random.PRNGKey(1), (2, 4, 12, 12), dtype=jnp.float32)
    out2 = jax.block_until_ready(maxpool2d_k3_ceil(x2))
    assert out2.shape == (2, 4, 4, 4), out2.shape
    assert jnp.allclose(out2, _reference_maxpool(x2)), "mismatch on 12x12 input"

    print("KERNEL_OK")
</pallas_src>

<mosaic_0001>
module attributes {stable_mosaic.version = 11 : i64} {
  func.func @_maxpool_kernel(%arg0: i32, %arg1: i32, %arg2: memref<9x16x1x8xf32, #tpu.memory_space<vmem>>, %arg3: memref<3x6x1x8xf32, #tpu.memory_space<vmem>>) attributes {dimension_semantics = [#tpu.dimension_semantics<parallel>, #tpu.dimension_semantics<parallel>], iteration_bounds = array<i64: 1, 2>, scalar_prefetch = 0 : i64, scratch_operands = 0 : i64, tpu.core_type = #tpu.core_type<tc>, window_params = [{transform_indices = @transform_0, window_bounds = array<i64: 9, 16, 1, 8>}, {transform_indices = @transform_1, window_bounds = array<i64: 3, 6, 1, 8>}]} {
    %c1_i32 = arith.constant 1 : i32
    %0 = arith.cmpi slt, %arg1, %c1_i32 : i32
    %1 = arith.extui %0 : i1 to i32
    %c0_i32 = arith.constant 0 : i32
    %2 = arith.cmpi ne, %1, %c0_i32 : i32
    scf.if %2 {
      %c0 = arith.constant 0 : index
      %c0_2 = arith.constant 0 : index
      %c0_3 = arith.constant 0 : index
      %c0_4 = arith.constant 0 : index
      %6 = vector.load %arg2[%c0, %c0_2, %c0_3, %c0_4] : memref<9x16x1x8xf32, #tpu.memory_space<vmem>>, vector<9x16x1x8xf32>
      %7 = vector.extract_strided_slice %6 {offsets = [0, 0, 0, 0], sizes = [9, 15, 1, 8], strides = [1, 1, 1, 1]} : vector<9x16x1x8xf32> to vector<9x15x1x8xf32>
      %8 = vector.shape_cast %7 : vector<9x15x1x8xf32> to vector<3x3x5x3x1x8xf32>
      %9 = vector.extract_strided_slice %8 {offsets = [0, 0, 0, 0, 0, 0], sizes = [3, 1, 5, 1, 1, 8], strides = [1, 1, 1, 1, 1, 1]} : vector<3x3x5x3x1x8xf32> to vector<3x1x5x1x1x8xf32>
      %10 = vector.shape_cast %9 : vector<3x1x5x1x1x8xf32> to vector<3x5x1x8xf32>
      %11 = vector.extract_strided_slice %8 {offsets = [0, 0, 0, 1, 0, 0], sizes = [3, 1, 5, 1, 1, 8], strides = [1, 1, 1, 1, 1, 1]} : vector<3x3x5x3x1x8xf32> to vector<3x1x5x1x1x8xf32>
      %12 = vector.shape_cast %11 : vector<3x1x5x1x1x8xf32> to vector<3x5x1x8xf32>
      %13 = arith.maximumf %10, %12 : vector<3x5x1x8xf32>
      %14 = vector.extract_strided_slice %8 {offsets = [0, 0, 0, 2, 0, 0], sizes = [3, 1, 5, 1, 1, 8], strides = [1, 1, 1, 1, 1, 1]} : vector<3x3x5x3x1x8xf32> to vector<3x1x5x1x1x8xf32>
      %15 = vector.shape_cast %14 : vector<3x1x5x1x1x8xf32> to vector<3x5x1x8xf32>
      %16 = arith.maximumf %13, %15 : vector<3x5x1x8xf32>
      %17 = vector.extract_strided_slice %8 {offsets = [0, 1, 0, 0, 0, 0], sizes = [3, 1, 5, 1, 1, 8], strides = [1, 1, 1, 1, 1, 1]} : vector<3x3x5x3x1x8xf32> to vector<3x1x5x1x1x8xf32>
      %18 = vector.shape_cast %17 : vector<3x1x5x1x1x8xf32> to vector<3x5x1x8xf32>
      %19 = arith.maximumf %16, %18 : vector<3x5x1x8xf32>
      %20 = vector.extract_strided_slice %8 {offsets = [0, 1, 0, 1, 0, 0], sizes = [3, 1, 5, 1, 1, 8], strides = [1, 1, 1, 1, 1, 1]} : vector<3x3x5x3x1x8xf32> to vector<3x1x5x1x1x8xf32>
      %21 = vector.shape_cast %20 : vector<3x1x5x1x1x8xf32> to vector<3x5x1x8xf32>
      %22 = arith.maximumf %19, %21 : vector<3x5x1x8xf32>
      %23 = vector.extract_strided_slice %8 {offsets = [0, 1, 0, 2, 0, 0], sizes = [3, 1, 5, 1, 1, 8], strides = [1, 1, 1, 1, 1, 1]} : vector<3x3x5x3x1x8xf32> to vector<3x1x5x1x1x8xf32>
      %24 = vector.shape_cast %23 : vector<3x1x5x1x1x8xf32> to vector<3x5x1x8xf32>
      %25 = arith.maximumf %22, %24 : vector<3x5x1x8xf32>
      %26 = vector.extract_strided_slice %8 {offsets = [0, 2, 0, 0, 0, 0], sizes = [3, 1, 5, 1, 1, 8], strides = [1, 1, 1, 1, 1, 1]} : vector<3x3x5x3x1x8xf32> to vector<3x1x5x1x1x8xf32>
      %27 = vector.shape_cast %26 : vector<3x1x5x1x1x8xf32> to vector<3x5x1x8xf32>
      %28 = arith.maximumf %25, %27 : vector<3x5x1x8xf32>
      %29 = vector.extract_strided_slice %8 {offsets = [0, 2, 0, 1, 0, 0], sizes = [3, 1, 5, 1, 1, 8], strides = [1, 1, 1, 1, 1, 1]} : vector<3x3x5x3x1x8xf32> to vector<3x1x5x1x1x8xf32>
      %30 = vector.shape_cast %29 : vector<3x1x5x1x1x8xf32> to vector<3x5x1x8xf32>
      %31 = arith.maximumf %28, %30 : vector<3x5x1x8xf32>
      %32 = vector.extract_strided_slice %8 {offsets = [0, 2, 0, 2, 0, 0], sizes = [3, 1, 5, 1, 1, 8], strides = [1, 1, 1, 1, 1, 1]} : vector<3x3x5x3x1x8xf32> to vector<3x1x5x1x1x8xf32>
      %33 = vector.shape_cast %32 : vector<3x1x5x1x1x8xf32> to vector<3x5x1x8xf32>
      %34 = arith.maximumf %31, %33 : vector<3x5x1x8xf32>
      %35 = vector.extract_strided_slice %6 {offsets = [0, 15, 0, 0], sizes = [9, 1, 1, 8], strides = [1, 1, 1, 1]} : vector<9x16x1x8xf32> to vector<9x1x1x8xf32>
      %36 = vector.shape_cast %35 : vector<9x1x1x8xf32> to vector<3x3x1x1x8xf32>
      %37 = vector.extract_strided_slice %36 {offsets = [0, 0, 0, 0, 0], sizes = [3, 1, 1, 1, 8], strides = [1, 1, 1, 1, 1]} : vector<3x3x1x1x8xf32> to vector<3x1x1x1x8xf32>
      %38 = vector.shape_cast %37 : vector<3x1x1x1x8xf32> to vector<3x1x8xf32>
      %39 = vector.extract_strided_slice %36 {offsets = [0, 1, 0, 0, 0], sizes = [3, 1, 1, 1, 8], strides = [1, 1, 1, 1, 1]} : vector<3x3x1x1x8xf32> to vector<3x1x1x1x8xf32>
      %40 = vector.shape_cast %39 : vector<3x1x1x1x8xf32> to vector<3x1x8xf32>
      %41 = arith.maximumf %38, %40 : vector<3x1x8xf32>
      %42 = vector.extract_strided_slice %36 {offsets = [0, 2, 0, 0, 0], sizes = [3, 1, 1, 1, 8], strides = [1, 1, 1, 1, 1]} : vector<3x3x1x1x8xf32> to vector<3x1x1x1x8xf32>
      %43 = vector.shape_cast %42 : vector<3x1x1x1x8xf32> to vector<3x1x8xf32>
      %44 = arith.maximumf %41, %43 : vector<3x1x8xf32>
      %c0_5 = arith.constant 0 : index
      %c0_6 = arith.constant 0 : index
      %c0_7 = arith.constant 0 : index
      %c0_8 = arith.constant 0 : index
      %45 = vector.load %arg3[%c0_5, %c0_6, %c0_7, %c0_8] : memref<3x6x1x8xf32, #tpu.memory_space<vmem>>, vector<3x5x1x8xf32>
      tpu.vector_store %arg3[%c0_5, %c0_6, %c0_7, %c0_8], %34 {strides = array<i32>} : memref<3x6x1x8xf32, #tpu.memory_space<vmem>>, vector<3x5x1x8xf32>,
      %46 = vector.shape_cast %44 : vector<3x1x8xf32> to vector<3x1x1x8xf32>
      %c0_9 = arith.constant 0 : index
      %c5 = arith.constant 5 : index
      %c0_10 = arith.constant 0 : index
      %c0_11 = arith.constant 0 : index
      %47 = vector.load %arg3[%c0_9, %c5, %c0_10, %c0_11] : memref<3x6x1x8xf32, #tpu.memory_space<vmem>>, vector<3x1x1x8xf32>
      tpu.vector_store %arg3[%c0_9, %c5, %c0_10, %c0_11], %46 {strides = array<i32>} : memref<3x6x1x8xf32, #tpu.memory_space<vmem>>, vector<3x1x1x8xf32>,
    } else {
    }
    %c1_i32_0 = arith.constant 1 : i32
    %3 = arith.cmpi eq, %arg1, %c1_i32_0 : i32
    %4 = arith.extui %3 : i1 to i32
    %c0_i32_1 = arith.constant 0 : i32
    %5 = arith.cmpi ne, %4, %c0_i32_1 : i32
    scf.if %5 {
      %c0 = arith.constant 0 : index
      %c0_2 = arith.constant 0 : index
      %c0_3 = arith.constant 0 : index
      %c0_4 = arith.constant 0 : index
      %6 = vector.load %arg2[%c0, %c0_2, %c0_3, %c0_4] : memref<9x16x1x8xf32, #tpu.memory_space<vmem>>, vector<6x16x1x8xf32>
      %7 = vector.extract_strided_slice %6 {offsets = [0, 0, 0, 0], sizes = [6, 15, 1, 8], strides = [1, 1, 1, 1]} : vector<6x16x1x8xf32> to vector<6x15x1x8xf32>
      %8 = vector.shape_cast %7 : vector<6x15x1x8xf32> to vector<2x3x5x3x1x8xf32>
      %9 = vector.extract_strided_slice %8 {offsets = [0, 0, 0, 0, 0, 0], sizes = [2, 1, 5, 1, 1, 8], strides = [1, 1, 1, 1, 1, 1]} : vector<2x3x5x3x1x8xf32> to vector<2x1x5x1x1x8xf32>
      %10 = vector.shape_cast %9 : vector<2x1x5x1x1x8xf32> to vector<2x5x1x8xf32>
      %11 = vector.extract_strided_slice %8 {offsets = [0, 0, 0, 1, 0, 0], sizes = [2, 1, 5, 1, 1, 8], strides = [1, 1, 1, 1, 1, 1]} : vector<2x3x5x3x1x8xf32> to vector<2x1x5x1x1x8xf32>
      %12 = vector.shape_cast %11 : vector<2x1x5x1x1x8xf32> to vector<2x5x1x8xf32>
      %13 = arith.maximumf %10, %12 : vector<2x5x1x8xf32>
      %14 = vector.extract_strided_slice %8 {offsets = [0, 0, 0, 2, 0, 0], sizes = [2, 1, 5, 1, 1, 8], strides = [1, 1, 1, 1, 1, 1]} : vector<2x3x5x3x1x8xf32> to vector<2x1x5x1x1x8xf32>
      %15 = vector.shape_cast %14 : vector<2x1x5x1x1x8xf32> to vector<2x5x1x8xf32>
      %16 = arith.maximumf %13, %15 : vector<2x5x1x8xf32>
      %17 = vector.extract_strided_slice %8 {offsets = [0, 1, 0, 0, 0, 0], sizes = [2, 1, 5, 1, 1, 8], strides = [1, 1, 1, 1, 1, 1]} : vector<2x3x5x3x1x8xf32> to vector<2x1x5x1x1x8xf32>
      %18 = vector.shape_cast %17 : vector<2x1x5x1x1x8xf32> to vector<2x5x1x8xf32>
      %19 = arith.maximumf %16, %18 : vector<2x5x1x8xf32>
      %20 = vector.extract_strided_slice %8 {offsets = [0, 1, 0, 1, 0, 0], sizes = [2, 1, 5, 1, 1, 8], strides = [1, 1, 1, 1, 1, 1]} : vector<2x3x5x3x1x8xf32> to vector<2x1x5x1x1x8xf32>
      %21 = vector.shape_cast %20 : vector<2x1x5x1x1x8xf32> to vector<2x5x1x8xf32>
      %22 = arith.maximumf %19, %21 : vector<2x5x1x8xf32>
      %23 = vector.extract_strided_slice %8 {offsets = [0, 1, 0, 2, 0, 0], sizes = [2, 1, 5, 1, 1, 8], strides = [1, 1, 1, 1, 1, 1]} : vector<2x3x5x3x1x8xf32> to vector<2x1x5x1x1x8xf32>
      %24 = vector.shape_cast %23 : vector<2x1x5x1x1x8xf32> to vector<2x5x1x8xf32>
      %25 = arith.maximumf %22, %24 : vector<2x5x1x8xf32>
      %26 = vector.extract_strided_slice %8 {offsets = [0, 2, 0, 0, 0, 0], sizes = [2, 1, 5, 1, 1, 8], strides = [1, 1, 1, 1, 1, 1]} : vector<2x3x5x3x1x8xf32> to vector<2x1x5x1x1x8xf32>
      %27 = vector.shape_cast %26 : vector<2x1x5x1x1x8xf32> to vector<2x5x1x8xf32>
      %28 = arith.maximumf %25, %27 : vector<2x5x1x8xf32>
      %29 = vector.extract_strided_slice %8 {offsets = [0, 2, 0, 1, 0, 0], sizes = [2, 1, 5, 1, 1, 8], strides = [1, 1, 1, 1, 1, 1]} : vector<2x3x5x3x1x8xf32> to vector<2x1x5x1x1x8xf32>
      %30 = vector.shape_cast %29 : vector<2x1x5x1x1x8xf32> to vector<2x5x1x8xf32>
      %31 = arith.maximumf %28, %30 : vector<2x5x1x8xf32>
      %32 = vector.extract_strided_slice %8 {offsets = [0, 2, 0, 2, 0, 0], sizes = [2, 1, 5, 1, 1, 8], strides = [1, 1, 1, 1, 1, 1]} : vector<2x3x5x3x1x8xf32> to vector<2x1x5x1x1x8xf32>
      %33 = vector.shape_cast %32 : vector<2x1x5x1x1x8xf32> to vector<2x5x1x8xf32>
      %34 = arith.maximumf %31, %33 : vector<2x5x1x8xf32>
      %35 = vector.extract_strided_slice %6 {offsets = [0, 15, 0, 0], sizes = [6, 1, 1, 8], strides = [1, 1, 1, 1]} : vector<6x16x1x8xf32> to vector<6x1x1x8xf32>
      %36 = vector.shape_cast %35 : vector<6x1x1x8xf32> to vector<2x3x1x1x8xf32>
      %37 = vector.extract_strided_slice %36 {offsets = [0, 0, 0, 0, 0], sizes = [2, 1, 1, 1, 8], strides = [1, 1, 1, 1, 1]} : vector<2x3x1x1x8xf32> to vector<2x1x1x1x8xf32>
      %38 = vector.shape_cast %37 : vector<2x1x1x1x8xf32> to vector<2x1x8xf32>
      %39 = vector.extract_strided_slice %36 {offsets = [0, 1, 0, 0, 0], sizes = [2, 1, 1, 1, 8], strides = [1, 1, 1, 1, 1]} : vector<2x3x1x1x8xf32> to vector<2x1x1x1x8xf32>
      %40 = vector.shape_cast %39 : vector<2x1x1x1x8xf32> to vector<2x1x8xf32>
      %41 = arith.maximumf %38, %40 : vector<2x1x8xf32>
      %42 = vector.extract_strided_slice %36 {offsets = [0, 2, 0, 0, 0], sizes = [2, 1, 1, 1, 8], strides = [1, 1, 1, 1, 1]} : vector<2x3x1x1x8xf32> to vector<2x1x1x1x8xf32>
      %43 = vector.shape_cast %42 : vector<2x1x1x1x8xf32> to vector<2x1x8xf32>
      %44 = arith.maximumf %41, %43 : vector<2x1x8xf32>
      %c0_5 = arith.constant 0 : index
      %c0_6 = arith.constant 0 : index
      %c0_7 = arith.constant 0 : index
      %c0_8 = arith.constant 0 : index
      %45 = vector.load %arg3[%c0_5, %c0_6, %c0_7, %c0_8] : memref<3x6x1x8xf32, #tpu.memory_space<vmem>>, vector<2x5x1x8xf32>
      tpu.vector_store %arg3[%c0_5, %c0_6, %c0_7, %c0_8], %34 {strides = array<i32>} : memref<3x6x1x8xf32, #tpu.memory_space<vmem>>, vector<2x5x1x8xf32>,
      %46 = vector.shape_cast %44 : vector<2x1x8xf32> to vector<2x1x1x8xf32>
      %c0_9 = arith.constant 0 : index
      %c5 = arith.constant 5 : index
      %c0_10 = arith.constant 0 : index
      %c0_11 = arith.constant 0 : index
      %47 = vector.load %arg3[%c0_9, %c5, %c0_10, %c0_11] : memref<3x6x1x8xf32, #tpu.memory_space<vmem>>, vector<2x1x1x8xf32>
      tpu.vector_store %arg3[%c0_9, %c5, %c0_10, %c0_11], %46 {strides = array<i32>} : memref<3x6x1x8xf32, #tpu.memory_space<vmem>>, vector<2x1x1x8xf32>,
      %c6 = arith.constant 6 : index
      %c0_12 = arith.constant 0 : index
      %c0_13 = arith.constant 0 : index
      %c0_14 = arith.constant 0 : index
      %48 = vector.load %arg2[%c6, %c0_12, %c0_13, %c0_14] : memref<9x16x1x8xf32, #tpu.memory_space<vmem>>, vector<1x16x1x8xf32>
      %49 = vector.shape_cast %48 : vector<1x16x1x8xf32> to vector<16x1x8xf32>
      %50 = vector.extract_strided_slice %49 {offsets = [0, 0, 0], sizes = [15, 1, 8], strides = [1, 1, 1]} : vector<16x1x8xf32> to vector<15x1x8xf32>
      %51 = vector.shape_cast %50 : vector<15x1x8xf32> to vector<5x3x1x8xf32>
      %52 = vector.extract_strided_slice %51 {offsets = [0, 0, 0, 0], sizes = [5, 1, 1, 8], strides = [1, 1, 1, 1]} : vector<5x3x1x8xf32> to vector<5x1x1x8xf32>
      %53 = vector.shape_cast %52 : vector<5x1x1x8xf32> to vector<5x1x8xf32>
      %54 = vector.extract_strided_slice %51 {offsets = [0, 1, 0, 0], sizes = [5, 1, 1, 8], strides = [1, 1, 1, 1]} : vector<5x3x1x8xf32> to vector<5x1x1x8xf32>
      %55 = vector.shape_cast %54 : vector<5x1x1x8xf32> to vector<5x1x8xf32>
      %56 = arith.maximumf %53, %55 : vector<5x1x8xf32>
      %57 = vector.extract_strided_slice %51 {offsets = [0, 2, 0, 0], sizes = [5, 1, 1, 8], strides = [1, 1, 1, 1]} : vector<5x3x1x8xf32> to vector<5x1x1x8xf32>
      %58 = vector.shape_cast %57 : vector<5x1x1x8xf32> to vector<5x1x8xf32>
      %59 = arith.maximumf %56, %58 : vector<5x1x8xf32>
      %60 = vector.extract_strided_slice %49 {offsets = [15, 0, 0], sizes = [1, 1, 8], strides = [1, 1, 1]} : vector<16x1x8xf32> to vector<1x1x8xf32>
      %61 = vector.shape_cast %60 : vector<1x1x8xf32> to vector<1x8xf32>
      %62 = vector.shape_cast %59 : vector<5x1x8xf32> to vector<1x5x1x8xf32>
      %c2 = arith.constant 2 : index
      %c0_15 = arith.constant 0 : index
      %c0_16 = arith.constant 0 : index
      %c0_17 = arith.constant 0 : index
      %63 = vector.load %arg3[%c2, %c0_15, %c0_16, %c0_17] : memref<3x6x1x8xf32, #tpu.memory_space<vmem>>, vector<1x5x1x8xf32>
      tpu.vector_store %arg3[%c2, %c0_15, %c0_16, %c0_17], %62 {strides = array<i32>} : memref<3x6x1x8xf32, #tpu.memory_space<vmem>>, vector<1x5x1x8xf32>,
      %64 = vector.shape_cast %61 : vector<1x8xf32> to vector<1x1x1x8xf32>
      %c2_18 = arith.constant 2 : index
      %c5_19 = arith.constant 5 : index
      %c0_20 = arith.constant 0 : index
      %c0_21 = arith.constant 0 : index
      %65 = vector.load %arg3[%c2_18, %c5_19, %c0_20, %c0_21] : memref<3x6x1x8xf32, #tpu.memory_space<vmem>>, vector<1x1x1x8xf32>
      tpu.vector_store %arg3[%c2_18, %c5_19, %c0_20, %c0_21], %64 {strides = array<i32>} : memref<3x6x1x8xf32, #tpu.memory_space<vmem>>, vector<1x1x1x8xf32>,
    } else {
    }
    return
  }
  func.func @transform_0(%arg0: i32, %arg1: i32) -> (i32, i32, i32, i32) {
    %c0_i32 = arith.constant 0 : i32
    %c0_i32_0 = arith.constant 0 : i32
    %c0_i32_1 = arith.constant 0 : i32
    return %arg1, %c0_i32, %arg0, %c0_i32_0 : i32, i32, i32, i32
  }
  func.func @transform_1(%arg0: i32, %arg1: i32) -> (i32, i32, i32, i32) {
    %c0_i32 = arith.constant 0 : i32
    %c0_i32_0 = arith.constant 0 : i32
    %c0_i32_1 = arith.constant 0 : i32
    return %arg1, %c0_i32, %arg0, %c0_i32_0 : i32, i32, i32, i32
  }
}

</mosaic_0001>

<llo_original>
// kernel: tpu_custom_call.1
$region0: #{tpu_custom_call.1}
  #allocation0 [shape = 'u32[]', space=smem, size = 0x4, offset = 0x4, fixed_abs, tag = 'smem constant byte address 0x4 - core index']
  #allocation1 [shape = 'u32[144,128]{1,0:T(1,128)}', space=vmem, size = 0x12000, scoped, tag = 'internal scratch']
  %s0 = inlined_call_operand.vmem [shape: f32[16,16,1,8], index: 0, kind: input, shape index: {}]
  %s1 = inlined_call_operand.hbm [shape: f32[6,6,1,8], index: 1, kind: output, shape index: {}]
  %s2 = sld [smem:[#allocation0]]
  $region45: #{tpu_custom_call.1} parent=0
    _
  %s4 = ssub.s32 1, %s2
  %s5 = scalar_select 0, %s4, %s2
  $region1: #{tpu_custom_call.1} parent=0
    #allocation2 [shape = 'u8[18432]{0}', space=vmem, size = 0x4800, scoped, tag = 'output window, operand 0']
    #allocation3 [shape = 's32[2]{0}', space=sflag, size = 0x8, scoped, tag = 'scoped memory for tpu_custom_call.1']
    %6 = vsyncpa [#allocation3], 0
    %s7 = scalar_lea.sflag [#allocation3], 1
    %8 = vsyncpa %s7, 0
    loop: start=0, step=1, limit=4
    $region2: #{tpu_custom_call.1} parent=1 // loop_pre_header
      _
    $region3: #{tpu_custom_call.1} parent=1 // loop_header
      %s10 = sphi 0, %s14
      %p11 = scmp.ge.s32.totalorder %s10, 4
      %s17 = sphi 0, %s29
      %s18 = sphi 0, %s25
      %s19 = sphi 0, %s17
      %s20 = sphi 0, %s18
      %s21 = sphi 0, %s19
      %s22 = sphi 0, %s20
      %s34 = sphi 0, %s36
      %s37 = sphi 0, %s34
      %s38 = sphi 0, %s37
      %s54 = sphi 0, %s38
      %s62 = sphi 0, %s64
      %s65 = sphi 0, %s62
      %s66 = sphi 0, %s65
      %s82 = sphi 0, %s66
    $region4: #{tpu_custom_call.1} parent=1 // loop_header_branch
      %13 = sbr.rel (%p11) target = $region8
    $region5: #{tpu_custom_call.1} parent=1 // loop_body
      %s15 = ssub.s32 %s10, 1
      %s16 = ssub.s32 %s10, 2
      %s23 = sadd.s32 1, %s18
      %p24 = scmp.ge.s32.totalorder %s23, 2
      %s25 = scalar_select %p24, 0, %s23
      %s26 = sadd.s32 1, %s17
      %s27 = scalar_select %p24, %s26, %s17
      %p28 = scmp.ge.s32.totalorder %s27, 1
      %s29 = scalar_select %p28, 0, %s27
      %s30 = ssub.s32 %s18, %s25
      %s31 = ssub.s32 %s17, %s29
      %s32 = sor.u32 %s30, %s31
      %p33 = scmp.eq.s32.totalorder %s32, 0
      %s35 = sadd.s32 %s34, 1
      %s36 = scalar_select %p33, %s34, %s35
      %p39 = pneg %p33
      %p40 = scmp.eq.s32.totalorder %s10, 1
      %p41 = por %p39, %p40
      %p42 = scmp.ne.s32.totalorder %s34, %s37
      %p43 = scmp.eq.s32.totalorder %s10, 0
      %p44 = por %p42, %p43
      %p45 = scmp.ne.s32.totalorder %s34, %s37
      %p46 = scmp.eq.s32.totalorder %s15, 1
      %p47 = por %p45, %p46
      %p48 = scmp.ne.s32.totalorder %s37, %s38
      %p49 = scmp.eq.s32.totalorder %s15, 0
      %p50 = por %p48, %p49
      %p51 = scmp.ne.s32.totalorder %s37, %s38
      %p52 = scmp.eq.s32.totalorder %s16, 1
      %p53 = por %p51, %p52
      %p55 = scmp.ne.s32.totalorder %s38, %s54
      %p56 = scmp.eq.s32.totalorder %s16, 0
      %p57 = por %p55, %p56
      %s58 = ssub.s32 %s18, %s25
      %s59 = ssub.s32 %s17, %s29
      %s60 = sor.u32 %s58, %s59
      %p61 = scmp.eq.s32.totalorder %s60, 0
      %s63 = sadd.s32 %s62, 1
      %s64 = scalar_select %p61, %s62, %s63
      %p67 = pneg %p61
      %p68 = scmp.eq.s32.totalorder %s10, 1
      %p69 = por %p67, %p68
      %p70 = scmp.ne.s32.totalorder %s62, %s65
      %p71 = scmp.eq.s32.totalorder %s10, 0
      %p72 = por %p70, %p71
      %p73 = scmp.ne.s32.totalorder %s62, %s65
      %p74 = scmp.eq.s32.totalorder %s15, 1
      %p75 = por %p73, %p74
      %p76 = scmp.ne.s32.totalorder %s65, %s66
      %p77 = scmp.eq.s32.totalorder %s15, 0
      %p78 = por %p76, %p77
      %p79 = scmp.ne.s32.totalorder %s65, %s66
      %p80 = scmp.eq.s32.totalorder %s16, 1
      %p81 = por %p79, %p80
      %p83 = scmp.ne.s32.totalorder %s66, %s82
      %p84 = scmp.eq.s32.totalorder %s16, 0
      %p85 = por %p83, %p84
      %p86 = scmp.le.s32.totalorder 1, %s10
      %p87 = scmp.lt.s32.totalorder %s10, 3
      %p88 = pnand %p86, %p87
      %p89 = pneg %p88
      // Predicated region
      $region9: #{tpu_custom_call.1} parent=5 // pred_check
        _
      $region10: #{tpu_custom_call.1} parent=5 // pred_check_branch
        %91 = sbr.rel (%p88) target = $region12
      $region11: #{tpu_custom_call.1} parent=5 // pred_region
        %s92 = ssub.s32 %s10, 1
      $region12: #{tpu_custom_call.1} parent=5 // pred_fallthru
        _
      %p93 = scmp.lt.s32.totalorder %s10, 2
      // Predicated region
      $region13: #{tpu_custom_call.1} parent=5 // pred_check
        %p94 = pneg %p93
      $region14: #{tpu_custom_call.1} parent=5 // pred_check_branch
        %96 = sbr.rel (%p94) target = $region16
      $region15: #{tpu_custom_call.1} parent=5 // pred_region
        // Predicated region
        $region17: #{tpu_custom_call.1} parent=15 // pred_check
          %p97 = pneg %p44
        $region18: #{tpu_custom_call.1} parent=15 // pred_check_branch
          %99 = sbr.rel (%p97) target = $region20
        $region19: #{tpu_custom_call.1} parent=15 // pred_region
          %s100 = smul.u32 9, %s18
          %s101 = ssub.s32 16, %s100
          %p102 = scmp.lt.s32.totalorder %s101, 9
          %s103 = scalar_select %p102, %s101, 9
          %s104 = smul.u32 16, %s103
          %s105 = smul.u32 %s104, 16
          %p106 = scmp.lt.s32.totalorder %s100, 15
          %s107 = scalar_select %p106, %s100, 15
          %p108 = scmp.lt.s32.totalorder %s17, 0
          %s109 = scalar_select %p108, %s17, 0
          %s110 = smul.addr %s107, 16
          %s111 = sadd.s32 %s109, %s110
          %s112 = scalar_lea.vmem %s0, %s111
          %s113 = smul.u32 9, %s18
          %s114 = ssub.s32 16, %s113
          %p115 = scmp.lt.s32.totalorder %s114, 9
          %s116 = scalar_select %p115, %s114, 9
          %s117 = smul.u32 16, %s116
          %s118 = smul.u32 %s117, 16
        $region20: #{tpu_custom_call.1} parent=15 // pred_fallthru
          _
      $region16: #{tpu_custom_call.1} parent=5 // pred_fallthru
        _
      %p119 = scmp.le.s32.totalorder 1, %s10
      %p120 = scmp.lt.s32.totalorder %s10, 3
      %p121 = pnand %p119, %p120
      %p122 = pneg %p121
      // Predicated region
      $region21: #{tpu_custom_call.1} parent=5 // pred_check
        _
      $region22: #{tpu_custom_call.1} parent=5 // pred_check_branch
        %124 = sbr.rel (%p121) target = $region24
      $region23: #{tpu_custom_call.1} parent=5 // pred_region
        %s125 = ssub.s32 %s10, 1
        %s126 = smul.u32 9, %s20
        %s127 = ssub.s32 16, %s126
        %p128 = scmp.lt.s32.totalorder %s127, 9
        %s129 = scalar_select %p128, %s127, 9
        %s130 = smul.u32 16, %s129
        %s131 = smul.u32 %s130, 16
        %p132 = scmp.lt.s32.totalorder %s126, 15
        %s133 = scalar_select %p132, %s126, 15
        %p134 = scmp.lt.s32.totalorder %s19, 0
        %s135 = scalar_select %p134, %s19, 0
        %s136 = smul.addr %s133, 16
        %s137 = sadd.s32 %s135, %s136
        %s138 = scalar_lea.vmem %s0, %s137
        %p139 = pneg %p50
        %p140 = pneg %p47
        %p141 = pneg %p78
        %p142 = pneg %p75
        %s143 = sand.u32 %s65, 1
        %s144 = scalar_lea.sflag [#allocation3], %s143
        %s145 = sand.u32 %s65, 1
        %s146 = smul.addr %s145, 18
        %s147 = scalar_lea.vmem [#allocation2], %s146
        %s148 = smul.u32 9, %s20
        %s149 = ssub.s32 16, %s148
        %p150 = scmp.lt.s32.totalorder %s149, 9
        %s151 = scalar_select %p150, %s149, 9
        %s152 = smul.u32 16, %s151
        %s153 = smul.u32 %s152, 16
        %p154 = scmp.lt.s32.totalorder %s148, 15
        %s155 = scalar_select %p154, %s148, 15
        %p156 = scmp.lt.s32.totalorder %s19, 0
        %s157 = scalar_select %p156, %s19, 0
        %s158 = smul.addr %s155, 16
        %s159 = sadd.s32 %s157, %s158
        %s160 = scalar_lea.vmem %s0, %s159
        %s161 = smul.u32 9, %s20
        %s162 = ssub.s32 16, %s161
        %p163 = scmp.lt.s32.totalorder %s162, 9
        %s164 = scalar_select %p163, %s162, 9
        %s165 = smul.u32 16, %s164
        %s166 = smul.u32 %s165, 16
        %s167 = smul.u32 3, %s20
        %p168 = scmp.lt.s32.totalorder %s20, 1
        // Predicated region
        $region25: #{tpu_custom_call.1} parent=23 // pred_check
          %p169 = pneg %p168
        $region26: #{tpu_custom_call.1} parent=23 // pred_check_branch
          %171 = sbr.rel (%p169) target = $region28
        $region27: #{tpu_custom_call.1} parent=23 // pred_region
          %v172 = vld [vmem:[%s160] sm:$0x1]
          %v173 = vld [vmem:[%s160 + $0x1] sm:$0x1]
          %v174 = vld [vmem:[%s160 + $0x2] sm:$0x1]
          %v175 = vld [vmem:[%s160 + $0x3] sm:$0x1]
          %v176 = vld [vmem:[%s160 + $0x4] sm:$0x1]
          %v177 = vld [vmem:[%s160 + $0x5] sm:$0x1]
          %v178 = vld [vmem:[%s160 + $0x6] sm:$0x1]
          %v179 = vld [vmem:[%s160 + $0x7] sm:$0x1]
          %v180 = vld [vmem:[%s160 + $0x8] sm:$0x1]
          %v181 = vld [vmem:[%s160 + $0x9] sm:$0x1]
          %v182 = vld [vmem:[%s160 + $0xa] sm:$0x1]
          %v183 = vld [vmem:[%s160 + $0xb] sm:$0x1]
          %v184 = vld [vmem:[%s160 + $0xc] sm:$0x1]
          %v185 = vld [vmem:[%s160 + $0xd] sm:$0x1]
          %v186 = vld [vmem:[%s160 + $0xe] sm:$0x1]
          %v187 = vld [vmem:[%s160 + $0xf] sm:$0x1]
          %v188 = vld [vmem:[%s160 + $0x10] sm:$0x1]
          %v189 = vld [vmem:[%s160 + $0x11] sm:$0x1]
          %v190 = vld [vmem:[%s160 + $0x12] sm:$0x1]
          %v191 = vld [vmem:[%s160 + $0x13] sm:$0x1]
          %v192 = vld [vmem:[%s160 + $0x14] sm:$0x1]
          %v193 = vld [vmem:[%s160 + $0x15] sm:$0x1]
          %v194 = vld [vmem:[%s160 + $0x16] sm:$0x1]
          %v195 = vld [vmem:[%s160 + $0x17] sm:$0x1]
          %v196 = vld [vmem:[%s160 + $0x18] sm:$0x1]
          %v197 = vld [vmem:[%s160 + $0x19] sm:$0x1]
          %v198 = vld [vmem:[%s160 + $0x1a] sm:$0x1]
          %v199 = vld [vmem:[%s160 + $0x1b] sm:$0x1]
          %v200 = vld [vmem:[%s160 + $0x1c] sm:$0x1]
          %v201 = vld [vmem:[%s160 + $0x1d] sm:$0x1]
          %v202 = vld [vmem:[%s160 + $0x1e] sm:$0x1]
          %v203 = vld [vmem:[%s160 + $0x1f] sm:$0x1]
          %v204 = vld [vmem:[%s160 + $0x20] sm:$0x1]
          %v205 = vld [vmem:[%s160 + $0x21] sm:$0x1]
          %v206 = vld [vmem:[%s160 + $0x22] sm:$0x1]
          %v207 = vld [vmem:[%s160 + $0x23] sm:$0x1]
          %v208 = vld [vmem:[%s160 + $0x24] sm:$0x1]
          %v209 = vld [vmem:[%s160 + $0x25] sm:$0x1]
          %v210 = vld [vmem:[%s160 + $0x26] sm:$0x1]
          %v211 = vld [vmem:[%s160 + $0x27] sm:$0x1]
          %v212 = vld [vmem:[%s160 + $0x28] sm:$0x1]
          %v213 = vld [vmem:[%s160 + $0x29] sm:$0x1]
          %v214 = vld [vmem:[%s160 + $0x2a] sm:$0x1]
          %v215 = vld [vmem:[%s160 + $0x2b] sm:$0x1]
          %v216 = vld [vmem:[%s160 + $0x2c] sm:$0x1]
          %v217 = vld [vmem:[%s160 + $0x2d] sm:$0x1]
          %v218 = vld [vmem:[%s160 + $0x2e] sm:$0x1]
          %v219 = vld [vmem:[%s160 + $0x2f] sm:$0x1]
          %v220 = vld [vmem:[%s160 + $0x30] sm:$0x1]
          %v221 = vld [vmem:[%s160 + $0x31] sm:$0x1]
          %v222 = vld [vmem:[%s160 + $0x32] sm:$0x1]
          %v223 = vld [vmem:[%s160 + $0x33] sm:$0x1]
          %v224 = vld [vmem:[%s160 + $0x34] sm:$0x1]
          %v225 = vld [vmem:[%s160 + $0x35] sm:$0x1]
          %v226 = vld [vmem:[%s160 + $0x36] sm:$0x1]
          %v227 = vld [vmem:[%s160 + $0x37] sm:$0x1]
          %v228 = vld [vmem:[%s160 + $0x38] sm:$0x1]
          %v229 = vld [vmem:[%s160 + $0x39] sm:$0x1]
          %v230 = vld [vmem:[%s160 + $0x3a] sm:$0x1]
          %v231 = vld [vmem:[%s160 + $0x3b] sm:$0x1]
          %v232 = vld [vmem:[%s160 + $0x3c] sm:$0x1]
          %v233 = vld [vmem:[%s160 + $0x3d] sm:$0x1]
          %v234 = vld [vmem:[%s160 + $0x3e] sm:$0x1]
          %v235 = vld [vmem:[%s160 + $0x3f] sm:$0x1]
          %v236 = vld [vmem:[%s160 + $0x40] sm:$0x1]
          %v237 = vld [vmem:[%s160 + $0x41] sm:$0x1]
          %v238 = vld [vmem:[%s160 + $0x42] sm:$0x1]
          %v239 = vld [vmem:[%s160 + $0x43] sm:$0x1]
          %v240 = vld [vmem:[%s160 + $0x44] sm:$0x1]
          %v241 = vld [vmem:[%s160 + $0x45] sm:$0x1]
          %v242 = vld [vmem:[%s160 + $0x46] sm:$0x1]
          %v243 = vld [vmem:[%s160 + $0x47] sm:$0x1]
          %v244 = vld [vmem:[%s160 + $0x48] sm:$0x1]
          %v245 = vld [vmem:[%s160 + $0x49] sm:$0x1]
          %v246 = vld [vmem:[%s160 + $0x4a] sm:$0x1]
          %v247 = vld [vmem:[%s160 + $0x4b] sm:$0x1]
          %v248 = vld [vmem:[%s160 + $0x4c] sm:$0x1]
          %v249 = vld [vmem:[%s160 + $0x4d] sm:$0x1]
          %v250 = vld [vmem:[%s160 + $0x4e] sm:$0x1]
          %v251 = vld [vmem:[%s160 + $0x4f] sm:$0x1]
          %v252 = vld [vmem:[%s160 + $0x50] sm:$0x1]
          %v253 = vld [vmem:[%s160 + $0x51] sm:$0x1]
          %v254 = vld [vmem:[%s160 + $0x52] sm:$0x1]
          %v255 = vld [vmem:[%s160 + $0x53] sm:$0x1]
          %v256 = vld [vmem:[%s160 + $0x54] sm:$0x1]
          %v257 = vld [vmem:[%s160 + $0x55] sm:$0x1]
          %v258 = vld [vmem:[%s160 + $0x56] sm:$0x1]
          %v259 = vld [vmem:[%s160 + $0x57] sm:$0x1]
          %v260 = vld [vmem:[%s160 + $0x58] sm:$0x1]
          %v261 = vld [vmem:[%s160 + $0x59] sm:$0x1]
          %v262 = vld [vmem:[%s160 + $0x5a] sm:$0x1]
          %v263 = vld [vmem:[%s160 + $0x5b] sm:$0x1]
          %v264 = vld [vmem:[%s160 + $0x5c] sm:$0x1]
          %v265 = vld [vmem:[%s160 + $0x5d] sm:$0x1]
          %v266 = vld [vmem:[%s160 + $0x5e] sm:$0x1]
          %v267 = vld [vmem:[%s160 + $0x5f] sm:$0x1]
          %v268 = vld [vmem:[%s160 + $0x60] sm:$0x1]
          %v269 = vld [vmem:[%s160 + $0x61] sm:$0x1]
          %v270 = vld [vmem:[%s160 + $0x62] sm:$0x1]
          %v271 = vld [vmem:[%s160 + $0x63] sm:$0x1]
          %v272 = vld [vmem:[%s160 + $0x64] sm:$0x1]
          %v273 = vld [vmem:[%s160 + $0x65] sm:$0x1]
          %v274 = vld [vmem:[%s160 + $0x66] sm:$0x1]
          %v275 = vld [vmem:[%s160 + $0x67] sm:$0x1]
          %v276 = vld [vmem:[%s160 + $0x68] sm:$0x1]
          %v277 = vld [vmem:[%s160 + $0x69] sm:$0x1]
          %v278 = vld [vmem:[%s160 + $0x6a] sm:$0x1]
          %v279 = vld [vmem:[%s160 + $0x6b] sm:$0x1]
          %v280 = vld [vmem:[%s160 + $0x6c] sm:$0x1]
          %v281 = vld [vmem:[%s160 + $0x6d] sm:$0x1]
          %v282 = vld [vmem:[%s160 + $0x6e] sm:$0x1]
          %v283 = vld [vmem:[%s160 + $0x6f] sm:$0x1]
          %v284 = vld [vmem:[%s160 + $0x70] sm:$0x1]
          %v285 = vld [vmem:[%s160 + $0x71] sm:$0x1]
          %v286 = vld [vmem:[%s160 + $0x72] sm:$0x1]
          %v287 = vld [vmem:[%s160 + $0x73] sm:$0x1]
          %v288 = vld [vmem:[%s160 + $0x74] sm:$0x1]
          %v289 = vld [vmem:[%s160 + $0x75] sm:$0x1]
          %v290 = vld [vmem:[%s160 + $0x76] sm:$0x1]
          %v291 = vld [vmem:[%s160 + $0x77] sm:$0x1]
          %v292 = vld [vmem:[%s160 + $0x78] sm:$0x1]
          %v293 = vld [vmem:[%s160 + $0x79] sm:$0x1]
          %v294 = vld [vmem:[%s160 + $0x7a] sm:$0x1]
          %v295 = vld [vmem:[%s160 + $0x7b] sm:$0x1]
          %v296 = vld [vmem:[%s160 + $0x7c] sm:$0x1]
          %v297 = vld [vmem:[%s160 + $0x7d] sm:$0x1]
          %v298 = vld [vmem:[%s160 + $0x7e] sm:$0x1]
          %v299 = vld [vmem:[%s160 + $0x7f] sm:$0x1]
          %v300 = vld [vmem:[%s160 + $0x80] sm:$0x1]
          %v301 = vld [vmem:[%s160 + $0x81] sm:$0x1]
          %v302 = vld [vmem:[%s160 + $0x82] sm:$0x1]
          %v303 = vld [vmem:[%s160 + $0x83] sm:$0x1]
          %v304 = vld [vmem:[%s160 + $0x84] sm:$0x1]
          %v305 = vld [vmem:[%s160 + $0x85] sm:$0x1]
          %v306 = vld [vmem:[%s160 + $0x86] sm:$0x1]
          %v307 = vld [vmem:[%s160 + $0x87] sm:$0x1]
          %v308 = vld [vmem:[%s160 + $0x88] sm:$0x1]
          %v309 = vld [vmem:[%s160 + $0x89] sm:$0x1]
          %v310 = vld [vmem:[%s160 + $0x8a] sm:$0x1]
          %v311 = vld [vmem:[%s160 + $0x8b] sm:$0x1]
          %v312 = vld [vmem:[%s160 + $0x8c] sm:$0x1]
          %v313 = vld [vmem:[%s160 + $0x8d] sm:$0x1]
          %v314 = vld [vmem:[%s160 + $0x8e] sm:$0x1]
          %v315 = vld [vmem:[%s160 + $0x8f] sm:$0x1]
          %v316 = vmax.f32 %v172, %v173
          %v317 = vmax.f32 %v175, %v176
          %v318 = vmax.f32 %v178, %v179
          %v319 = vmax.f32 %v181, %v182
          %v320 = vmax.f32 %v184, %v185
          %v321 = vmax.f32 %v220, %v221
          %v322 = vmax.f32 %v223, %v224
          %v323 = vmax.f32 %v226, %v227
          %v324 = vmax.f32 %v229, %v230
          %v325 = vmax.f32 %v232, %v233
          %v326 = vmax.f32 %v268, %v269
          %v327 = vmax.f32 %v271, %v272
          %v328 = vmax.f32 %v274, %v275
          %v329 = vmax.f32 %v277, %v278
          %v330 = vmax.f32 %v280, %v281
          %v331 = vmax.f32 %v316, %v174
          %v332 = vmax.f32 %v317, %v177
          %v333 = vmax.f32 %v318, %v180
          %v334 = vmax.f32 %v319, %v183
          %v335 = vmax.f32 %v320, %v186
          %v336 = vmax.f32 %v321, %v222
          %v337 = vmax.f32 %v322, %v225
          %v338 = vmax.f32 %v323, %v228
          %v339 = vmax.f32 %v324, %v231
          %v340 = vmax.f32 %v325, %v234
          %v341 = vmax.f32 %v326, %v270
          %v342 = vmax.f32 %v327, %v273
          %v343 = vmax.f32 %v328, %v276
          %v344 = vmax.f32 %v329, %v279
          %v345 = vmax.f32 %v330, %v282
          %v346 = vmax.f32 %v331, %v188
          %v347 = vmax.f32 %v332, %v191
          %v348 = vmax.f32 %v333, %v194
          %v349 = vmax.f32 %v334, %v197
          %v350 = vmax.f32 %v335, %v200
          %v351 = vmax.f32 %v336, %v236
          %v352 = vmax.f32 %v337, %v239
          %v353 = vmax.f32 %v338, %v242
          %v354 = vmax.f32 %v339, %v245
          %v355 = vmax.f32 %v340, %v248
          %v356 = vmax.f32 %v341, %v284
          %v357 = vmax.f32 %v342, %v287
          %v358 = vmax.f32 %v343, %v290
          %v359 = vmax.f32 %v344, %v293
          %v360 = vmax.f32 %v345, %v296
          %v361 = vmax.f32 %v346, %v189
          %v362 = vmax.f32 %v347, %v192
          %v363 = vmax.f32 %v348, %v195
          %v364 = vmax.f32 %v349, %v198
          %v365 = vmax.f32 %v350, %v201
          %v366 = vmax.f32 %v351, %v237
          %v367 = vmax.f32 %v352, %v240
          %v368 = vmax.f32 %v353, %v243
          %v369 = vmax.f32 %v354, %v246
          %v370 = vmax.f32 %v355, %v249
          %v371 = vmax.f32 %v356, %v285
          %v372 = vmax.f32 %v357, %v288
          %v373 = vmax.f32 %v358, %v291
          %v374 = vmax.f32 %v359, %v294
          %v375 = vmax.f32 %v360, %v297
          %v376 = vmax.f32 %v361, %v190
          %v377 = vmax.f32 %v362, %v193
          %v378 = vmax.f32 %v363, %v196
          %v379 = vmax.f32 %v364, %v199
          %v380 = vmax.f32 %v365, %v202
          %v381 = vmax.f32 %v366, %v238
          %v382 = vmax.f32 %v367, %v241
          %v383 = vmax.f32 %v368, %v244
          %v384 = vmax.f32 %v369, %v247
          %v385 = vmax.f32 %v370, %v250
          %v386 = vmax.f32 %v371, %v286
          %v387 = vmax.f32 %v372, %v289
          %v388 = vmax.f32 %v373, %v292
          %v389 = vmax.f32 %v374, %v295
          %v390 = vmax.f32 %v375, %v298
          %v391 = vmax.f32 %v376, %v204
          %v392 = vmax.f32 %v377, %v207
          %v393 = vmax.f32 %v378, %v210
          %v394 = vmax.f32 %v379, %v213
          %v395 = vmax.f32 %v380, %v216
          %v396 = vmax.f32 %v381, %v252
          %v397 = vmax.f32 %v382, %v255
          %v398 = vmax.f32 %v383, %v258
          %v399 = vmax.f32 %v384, %v261
          %v400 = vmax.f32 %v385, %v264
          %v401 = vmax.f32 %v386, %v300
          %v402 = vmax.f32 %v387, %v303
          %v403 = vmax.f32 %v388, %v306
          %v404 = vmax.f32 %v389, %v309
          %v405 = vmax.f32 %v390, %v312
          %v406 = vmax.f32 %v391, %v205
          %v407 = vmax.f32 %v392, %v208
          %v408 = vmax.f32 %v393, %v211
          %v409 = vmax.f32 %v394, %v214
          %v410 = vmax.f32 %v395, %v217
          %v411 = vmax.f32 %v396, %v253
          %v412 = vmax.f32 %v397, %v256
          %v413 = vmax.f32 %v398, %v259
          %v414 = vmax.f32 %v399, %v262
          %v415 = vmax.f32 %v400, %v265
          %v416 = vmax.f32 %v401, %v301
          %v417 = vmax.f32 %v402, %v304
          %v418 = vmax.f32 %v403, %v307
          %v419 = vmax.f32 %v404, %v310
          %v420 = vmax.f32 %v405, %v313
          %v421 = vmax.f32 %v406, %v206
          %v422 = vmax.f32 %v407, %v209
          %v423 = vmax.f32 %v408, %v212
          %v424 = vmax.f32 %v409, %v215
          %v425 = vmax.f32 %v410, %v218
          %v426 = vmax.f32 %v411, %v254
          %v427 = vmax.f32 %v412, %v257
          %v428 = vmax.f32 %v413, %v260
          %v429 = vmax.f32 %v414, %v263
          %v430 = vmax.f32 %v415, %v266
          %v431 = vmax.f32 %v416, %v302
          %v432 = vmax.f32 %v417, %v305
          %v433 = vmax.f32 %v418, %v308
          %v434 = vmax.f32 %v419, %v311
          %v435 = vmax.f32 %v420, %v314
          %v436 = vmax.f32 %v187, %v203
          %v437 = vmax.f32 %v235, %v251
          %v438 = vmax.f32 %v283, %v299
          %v439 = vmax.f32 %v436, %v219
          %v440 = vmax.f32 %v437, %v267
          %v441 = vmax.f32 %v438, %v315
          %vm442 = vcmask 57344
          %443 = vst.msk [vmem:[%s147] sm:$0x1] %vm442, %v421
          %444 = vst.msk [vmem:[%s147 + $0x1] sm:$0x1] %vm442, %v422
          %445 = vst.msk [vmem:[%s147 + $0x2] sm:$0x1] %vm442, %v423
          %446 = vst.msk [vmem:[%s147 + $0x3] sm:$0x1] %vm442, %v424
          %447 = vst.msk [vmem:[%s147 + $0x4] sm:$0x1] %vm442, %v425
          %448 = vst.msk [vmem:[%s147 + $0x6] sm:$0x1] %vm442, %v426
          %449 = vst.msk [vmem:[%s147 + $0x7] sm:$0x1] %vm442, %v427
          %450 = vst.msk [vmem:[%s147 + $0x8] sm:$0x1] %vm442, %v428
          %451 = vst.msk [vmem:[%s147 + $0x9] sm:$0x1] %vm442, %v429
          %452 = vst.msk [vmem:[%s147 + $0xa] sm:$0x1] %vm442, %v430
          %453 = vst.msk [vmem:[%s147 + $0xc] sm:$0x1] %vm442, %v431
          %454 = vst.msk [vmem:[%s147 + $0xd] sm:$0x1] %vm442, %v432
          %455 = vst.msk [vmem:[%s147 + $0xe] sm:$0x1] %vm442, %v433
          %456 = vst.msk [vmem:[%s147 + $0xf] sm:$0x1] %vm442, %v434
          %457 = vst.msk [vmem:[%s147 + $0x10] sm:$0x1] %vm442, %v435
          %s458 = scalar_lea.vmem %s147, 5 [#allocation2]
          %459 = vst.msk [vmem:[%s458] sm:$0x1] %vm442, %v439
          %460 = vst.msk [vmem:[%s458 + $0x6] sm:$0x1] %vm442, %v440
          %461 = vst.msk [vmem:[%s458 + $0xc] sm:$0x1] %vm442, %v441
        $region28: #{tpu_custom_call.1} parent=23 // pred_fallthru
          _
        %p462 = scmp.eq.s32.totalorder %s20, 1
        // Predicated region
        $region29: #{tpu_custom_call.1} parent=23 // pred_check
          %p463 = pneg %p462
        $region30: #{tpu_custom_call.1} parent=23 // pred_check_branch
          %465 = sbr.rel (%p463) target = $region32
        $region31: #{tpu_custom_call.1} parent=23 // pred_region
          %v466 = vld [vmem:[%s160] sm:$0x1]
          %v467 = vld [vmem:[%s160 + $0x1] sm:$0x1]
          %v468 = vld [vmem:[%s160 + $0x2] sm:$0x1]
          %v469 = vld [vmem:[%s160 + $0x3] sm:$0x1]
          %v470 = vld [vmem:[%s160 + $0x4] sm:$0x1]
          %v471 = vld [vmem:[%s160 + $0x5] sm:$0x1]
          %v472 = vld [vmem:[%s160 + $0x6] sm:$0x1]
          %v473 = vld [vmem:[%s160 + $0x7] sm:$0x1]
          %v474 = vld [vmem:[%s160 + $0x8] sm:$0x1]
          %v475 = vld [vmem:[%s160 + $0x9] sm:$0x1]
          %v476 = vld [vmem:[%s160 + $0xa] sm:$0x1]
          %v477 = vld [vmem:[%s160 + $0xb] sm:$0x1]
          %v478 = vld [vmem:[%s160 + $0xc] sm:$0x1]
          %v479 = vld [vmem:[%s160 + $0xd] sm:$0x1]
          %v480 = vld [vmem:[%s160 + $0xe] sm:$0x1]
          %v481 = vld [vmem:[%s160 + $0xf] sm:$0x1]
          %v482 = vld [vmem:[%s160 + $0x10] sm:$0x1]
          %v483 = vld [vmem:[%s160 + $0x11] sm:$0x1]
          %v484 = vld [vmem:[%s160 + $0x12] sm:$0x1]
          %v485 = vld [vmem:[%s160 + $0x13] sm:$0x1]
          %v486 = vld [vmem:[%s160 + $0x14] sm:$0x1]
          %v487 = vld [vmem:[%s160 + $0x15] sm:$0x1]
          %v488 = vld [vmem:[%s160 + $0x16] sm:$0x1]
          %v489 = vld [vmem:[%s160 + $0x17] sm:$0x1]
          %v490 = vld [vmem:[%s160 + $0x18] sm:$0x1]
          %v491 = vld [vmem:[%s160 + $0x19] sm:$0x1]
          %v492 = vld [vmem:[%s160 + $0x1a] sm:$0x1]
          %v493 = vld [vmem:[%s160 + $0x1b] sm:$0x1]
          %v494 = vld [vmem:[%s160 + $0x1c] sm:$0x1]
          %v495 = vld [vmem:[%s160 + $0x1d] sm:$0x1]
          %v496 = vld [vmem:[%s160 + $0x1e] sm:$0x1]
          %v497 = vld [vmem:[%s160 + $0x1f] sm:$0x1]
          %v498 = vld [vmem:[%s160 + $0x20] sm:$0x1]
          %v499 = vld [vmem:[%s160 + $0x21] sm:$0x1]
          %v500 = vld [vmem:[%s160 + $0x22] sm:$0x1]
          %v501 = vld [vmem:[%s160 + $0x23] sm:$0x1]
          %v502 = vld [vmem:[%s160 + $0x24] sm:$0x1]
          %v503 = vld [vmem:[%s160 + $0x25] sm:$0x1]
          %v504 = vld [vmem:[%s160 + $0x26] sm:$0x1]
          %v505 = vld [vmem:[%s160 + $0x27] sm:$0x1]
          %v506 = vld [vmem:[%s160 + $0x28] sm:$0x1]
          %v507 = vld [vmem:[%s160 + $0x29] sm:$0x1]
          %v508 = vld [vmem:[%s160 + $0x2a] sm:$0x1]
          %v509 = vld [vmem:[%s160 + $0x2b] sm:$0x1]
          %v510 = vld [vmem:[%s160 + $0x2c] sm:$0x1]
          %v511 = vld [vmem:[%s160 + $0x2d] sm:$0x1]
          %v512 = vld [vmem:[%s160 + $0x2e] sm:$0x1]
          %v513 = vld [vmem:[%s160 + $0x2f] sm:$0x1]
          %v514 = vld [vmem:[%s160 + $0x30] sm:$0x1]
          %v515 = vld [vmem:[%s160 + $0x31] sm:$0x1]
          %v516 = vld [vmem:[%s160 + $0x32] sm:$0x1]
          %v517 = vld [vmem:[%s160 + $0x33] sm:$0x1]
          %v518 = vld [vmem:[%s160 + $0x34] sm:$0x1]
          %v519 = vld [vmem:[%s160 + $0x35] sm:$0x1]
          %v520 = vld [vmem:[%s160 + $0x36] sm:$0x1]
          %v521 = vld [vmem:[%s160 + $0x37] sm:$0x1]
          %v522 = vld [vmem:[%s160 + $0x38] sm:$0x1]
          %v523 = vld [vmem:[%s160 + $0x39] sm:$0x1]
          %v524 = vld [vmem:[%s160 + $0x3a] sm:$0x1]
          %v525 = vld [vmem:[%s160 + $0x3b] sm:$0x1]
          %v526 = vld [vmem:[%s160 + $0x3c] sm:$0x1]
          %v527 = vld [vmem:[%s160 + $0x3d] sm:$0x1]
          %v528 = vld [vmem:[%s160 + $0x3e] sm:$0x1]
          %v529 = vld [vmem:[%s160 + $0x3f] sm:$0x1]
          %v530 = vld [vmem:[%s160 + $0x40] sm:$0x1]
          %v531 = vld [vmem:[%s160 + $0x41] sm:$0x1]
          %v532 = vld [vmem:[%s160 + $0x42] sm:$0x1]
          %v533 = vld [vmem:[%s160 + $0x43] sm:$0x1]
          %v534 = vld [vmem:[%s160 + $0x44] sm:$0x1]
          %v535 = vld [vmem:[%s160 + $0x45] sm:$0x1]
          %v536 = vld [vmem:[%s160 + $0x46] sm:$0x1]
          %v537 = vld [vmem:[%s160 + $0x47] sm:$0x1]
          %v538 = vld [vmem:[%s160 + $0x48] sm:$0x1]
          %v539 = vld [vmem:[%s160 + $0x49] sm:$0x1]
          %v540 = vld [vmem:[%s160 + $0x4a] sm:$0x1]
          %v541 = vld [vmem:[%s160 + $0x4b] sm:$0x1]
          %v542 = vld [vmem:[%s160 + $0x4c] sm:$0x1]
          %v543 = vld [vmem:[%s160 + $0x4d] sm:$0x1]
          %v544 = vld [vmem:[%s160 + $0x4e] sm:$0x1]
          %v545 = vld [vmem:[%s160 + $0x4f] sm:$0x1]
          %v546 = vld [vmem:[%s160 + $0x50] sm:$0x1]
          %v547 = vld [vmem:[%s160 + $0x51] sm:$0x1]
          %v548 = vld [vmem:[%s160 + $0x52] sm:$0x1]
          %v549 = vld [vmem:[%s160 + $0x53] sm:$0x1]
          %v550 = vld [vmem:[%s160 + $0x54] sm:$0x1]
          %v551 = vld [vmem:[%s160 + $0x55] sm:$0x1]
          %v552 = vld [vmem:[%s160 + $0x56] sm:$0x1]
          %v553 = vld [vmem:[%s160 + $0x57] sm:$0x1]
          %v554 = vld [vmem:[%s160 + $0x58] sm:$0x1]
          %v555 = vld [vmem:[%s160 + $0x59] sm:$0x1]
          %v556 = vld [vmem:[%s160 + $0x5a] sm:$0x1]
          %v557 = vld [vmem:[%s160 + $0x5b] sm:$0x1]
          %v558 = vld [vmem:[%s160 + $0x5c] sm:$0x1]
          %v559 = vld [vmem:[%s160 + $0x5d] sm:$0x1]
          %v560 = vld [vmem:[%s160 + $0x5e] sm:$0x1]
          %v561 = vld [vmem:[%s160 + $0x5f] sm:$0x1]
          %v562 = vmax.f32 %v466, %v467
          %v563 = vmax.f32 %v469, %v470
          %v564 = vmax.f32 %v472, %v473
          %v565 = vmax.f32 %v475, %v476
          %v566 = vmax.f32 %v478, %v479
          %v567 = vmax.f32 %v514, %v515
          %v568 = vmax.f32 %v517, %v518
          %v569 = vmax.f32 %v520, %v521
          %v570 = vmax.f32 %v523, %v524
          %v571 = vmax.f32 %v526, %v527
          %v572 = vmax.f32 %v562, %v468
          %v573 = vmax.f32 %v563, %v471
          %v574 = vmax.f32 %v564, %v474
          %v575 = vmax.f32 %v565, %v477
          %v576 = vmax.f32 %v566, %v480
          %v577 = vmax.f32 %v567, %v516
          %v578 = vmax.f32 %v568, %v519
          %v579 = vmax.f32 %v569, %v522
          %v580 = vmax.f32 %v570, %v525
          %v581 = vmax.f32 %v571, %v528
          %v582 = vmax.f32 %v572, %v482
          %v583 = vmax.f32 %v573, %v485
          %v584 = vmax.f32 %v574, %v488
          %v585 = vmax.f32 %v575, %v491
          %v586 = vmax.f32 %v576, %v494
          %v587 = vmax.f32 %v577, %v530
          %v588 = vmax.f32 %v578, %v533
          %v589 = vmax.f32 %v579, %v536
          %v590 = vmax.f32 %v580, %v539
          %v591 = vmax.f32 %v581, %v542
          %v592 = vmax.f32 %v582, %v483
          %v593 = vmax.f32 %v583, %v486
          %v594 = vmax.f32 %v584, %v489
          %v595 = vmax.f32 %v585, %v492
          %v596 = vmax.f32 %v586, %v495
          %v597 = vmax.f32 %v587, %v531
          %v598 = vmax.f32 %v588, %v534
          %v599 = vmax.f32 %v589, %v537
          %v600 = vmax.f32 %v590, %v540
          %v601 = vmax.f32 %v591, %v543
          %v602 = vmax.f32 %v592, %v484
          %v603 = vmax.f32 %v593, %v487
          %v604 = vmax.f32 %v594, %v490
          %v605 = vmax.f32 %v595, %v493
          %v606 = vmax.f32 %v596, %v496
          %v607 = vmax.f32 %v597, %v532
          %v608 = vmax.f32 %v598, %v535
          %v609 = vmax.f32 %v599, %v538
          %v610 = vmax.f32 %v600, %v541
          %v611 = vmax.f32 %v601, %v544
          %v612 = vmax.f32 %v602, %v498
          %v613 = vmax.f32 %v603, %v501
          %v614 = vmax.f32 %v604, %v504
          %v615 = vmax.f32 %v605, %v507
          %v616 = vmax.f32 %v606, %v510
          %v617 = vmax.f32 %v607, %v546
          %v618 = vmax.f32 %v608, %v549
          %v619 = vmax.f32 %v609, %v552
          %v620 = vmax.f32 %v610, %v555
          %v621 = vmax.f32 %v611, %v558
          %v622 = vmax.f32 %v612, %v499
          %v623 = vmax.f32 %v613, %v502
          %v624 = vmax.f32 %v614, %v505
          %v625 = vmax.f32 %v615, %v508
          %v626 = vmax.f32 %v616, %v511
          %v627 = vmax.f32 %v617, %v547
          %v628 = vmax.f32 %v618, %v550
          %v629 = vmax.f32 %v619, %v553
          %v630 = vmax.f32 %v620, %v556
          %v631 = vmax.f32 %v621, %v559
          %v632 = vmax.f32 %v622, %v500
          %v633 = vmax.f32 %v623, %v503
          %v634 = vmax.f32 %v624, %v506
          %v635 = vmax.f32 %v625, %v509
          %v636 = vmax.f32 %v626, %v512
          %v637 = vmax.f32 %v627, %v548
          %v638 = vmax.f32 %v628, %v551
          %v639 = vmax.f32 %v629, %v554
          %v640 = vmax.f32 %v630, %v557
          %v641 = vmax.f32 %v631, %v560
          %v642 = vmax.f32 %v481, %v497
          %v643 = vmax.f32 %v529, %v545
          %v644 = vmax.f32 %v642, %v513
          %v645 = vmax.f32 %v643, %v561
          %vm646 = vcmask 57344
          %647 = vst.msk [vmem:[%s147] sm:$0x1] %vm646, %v632
          %648 = vst.msk [vmem:[%s147 + $0x1] sm:$0x1] %vm646, %v633
          %649 = vst.msk [vmem:[%s147 + $0x2] sm:$0x1] %vm646, %v634
          %650 = vst.msk [vmem:[%s147 + $0x3] sm:$0x1] %vm646, %v635
          %651 = vst.msk [vmem:[%s147 + $0x4] sm:$0x1] %vm646, %v636
          %652 = vst.msk [vmem:[%s147 + $0x6] sm:$0x1] %vm646, %v637
          %653 = vst.msk [vmem:[%s147 + $0x7] sm:$0x1] %vm646, %v638
          %654 = vst.msk [vmem:[%s147 + $0x8] sm:$0x1] %vm646, %v639
          %655 = vst.msk [vmem:[%s147 + $0x9] sm:$0x1] %vm646, %v640
          %656 = vst.msk [vmem:[%s147 + $0xa] sm:$0x1] %vm646, %v641
          %s657 = scalar_lea.vmem %s147, 5 [#allocation2]
          %658 = vst.msk [vmem:[%s657] sm:$0x1] %vm646, %v644
          %659 = vst.msk [vmem:[%s657 + $0x6] sm:$0x1] %vm646, %v645
          %s660 = scalar_lea.vmem %s160, 96
          %v661 = vld [vmem:[%s660] sm:$0x1]
          %v662 = vld [vmem:[%s660 + $0x1] sm:$0x1]
          %v663 = vld [vmem:[%s660 + $0x2] sm:$0x1]
          %v664 = vld [vmem:[%s660 + $0x3] sm:$0x1]
          %v665 = vld [vmem:[%s660 + $0x4] sm:$0x1]
          %v666 = vld [vmem:[%s660 + $0x5] sm:$0x1]
          %v667 = vld [vmem:[%s660 + $0x6] sm:$0x1]
          %v668 = vld [vmem:[%s660 + $0x7] sm:$0x1]
          %v669 = vld [vmem:[%s660 + $0x8] sm:$0x1]
          %v670 = vld [vmem:[%s660 + $0x9] sm:$0x1]
          %v671 = vld [vmem:[%s660 + $0xa] sm:$0x1]
          %v672 = vld [vmem:[%s660 + $0xb] sm:$0x1]
          %v673 = vld [vmem:[%s660 + $0xc] sm:$0x1]
          %v674 = vld [vmem:[%s660 + $0xd] sm:$0x1]
          %v675 = vld [vmem:[%s660 + $0xe] sm:$0x1]
          %v676 = vld [vmem:[%s660 + $0xf] sm:$0x1]
          %v677 = vmax.f32 %v661, %v662
          %v678 = vmax.f32 %v664, %v665
          %v679 = vmax.f32 %v667, %v668
          %v680 = vmax.f32 %v670, %v671
          %v681 = vmax.f32 %v673, %v674
          %v682 = vmax.f32 %v677, %v663
          %v683 = vmax.f32 %v678, %v666
          %v684 = vmax.f32 %v679, %v669
          %v685 = vmax.f32 %v680, %v672
          %v686 = vmax.f32 %v681, %v675
          %s687 = scalar_lea.vmem %s147, 12 [#allocation2]
          %688 = vst.msk [vmem:[%s687] sm:$0x1] %vm646, %v682
          %689 = vst.msk [vmem:[%s687 + $0x1] sm:$0x1] %vm646, %v683
          %690 = vst.msk [vmem:[%s687 + $0x2] sm:$0x1] %vm646, %v684
          %691 = vst.msk [vmem:[%s687 + $0x3] sm:$0x1] %vm646, %v685
          %692 = vst.msk [vmem:[%s687 + $0x4] sm:$0x1] %vm646, %v686
          %s693 = scalar_lea.vmem %s147, 17 [#allocation2]
          %694 = vst.msk [vmem:[%s693] sm:$0x1] %vm646, %v676
        $region32: #{tpu_custom_call.1} parent=23 // pred_fallthru
          _
        %s695 = sand.u32 %s65, 1
        %s696 = scalar_lea.sflag [#allocation3], %s695
        %s697 = sand.u32 %s65, 1
        %s698 = smul.addr %s697, 18
        %s699 = scalar_lea.vmem [#allocation2], %s698
        // Predicated region
        $region33: #{tpu_custom_call.1} parent=23 // pred_check
          %p700 = pneg %p75
        $region34: #{tpu_custom_call.1} parent=23 // pred_check_branch
          %702 = sbr.rel (%p700) target = $region36
        $region35: #{tpu_custom_call.1} parent=23 // pred_region
          %s703 = smul.u32 3, %s20
          %s705 = ssub.s32 288, 288
          %706 = vsyncadd %s696, %s705
          %s707 = smul.addr %s703, 6
          %s708 = sadd.s32 %s19, %s707
          %s709 = smul.addr %s708, 16
          %s710 = scalar_lea.hbm %s1, %s709
          %s711 = sshll.u32 %s699, 4
          %s712 = int_to_ptr.vmem [resolvable:$true] %s711
          %717 = dma.vmem_to_hbm [thread:$0]  %s712, 288, %s710, %s696, 16, 16, 1
        $region36: #{tpu_custom_call.1} parent=23 // pred_fallthru
          _
      $region24: #{tpu_custom_call.1} parent=5 // pred_fallthru
        _
      %p718 = scmp.le.s32.totalorder 2, %s10
      // Predicated region
      $region37: #{tpu_custom_call.1} parent=5 // pred_check
        %p719 = pneg %p718
      $region38: #{tpu_custom_call.1} parent=5 // pred_check_branch
        %721 = sbr.rel (%p719) target = $region40
      $region39: #{tpu_custom_call.1} parent=5 // pred_region
        %s722 = ssub.s32 %s10, 2
        // Predicated region
        $region41: #{tpu_custom_call.1} parent=39 // pred_check
          %p723 = pneg %p81
        $region42: #{tpu_custom_call.1} parent=39 // pred_check_branch
          %725 = sbr.rel (%p723) target = $region44
        $region43: #{tpu_custom_call.1} parent=39 // pred_region
          %s726 = sand.u32 %s66, 1
          %s727 = scalar_lea.sflag [#allocation3], %s726
          %s728 = sand.u32 %s66, 1
          %s729 = smul.addr %s728, 18
          %s730 = scalar_lea.vmem [#allocation2], %s729
          %731 = dma.done %s727, 288
        $region44: #{tpu_custom_call.1} parent=39 // pred_fallthru
          _
      $region40: #{tpu_custom_call.1} parent=5 // pred_fallthru
        _
    $region6: #{tpu_custom_call.1} parent=1 // loop_footer
      %s14 = sadd.s32 1, %s10
    $region7: #{tpu_custom_call.1} parent=1 // loop_footer_branch
      %9 = sbr.rel target = $region3
    $region8: #{tpu_custom_call.1} parent=1 // loop_exit
      _
    %732 = vsyncpa [#allocation3], 1
    %s733 = scalar_lea.sflag [#allocation3], 1
    %734 = vsyncpa %s733, 1

</llo_original>
